<compile_context>
chip_gen: v6e
topology: v6e:2x2x1
jax: 0.10.0
libtpu: 0.0.40
codegen_flags: <defaults>
</compile_context>

<pallas_src>
import functools

import jax
import jax.numpy as jnp
from jax.experimental import pallas as pl
from jax.experimental.pallas import tpu as pltpu

BN_EPS = 1e-5


def _cascade_kernel(nblocks, nc_pad, x_ref, wxa_ref, wfbm_ref, bias_ref, out_ref):
    """IMTA classifier cascade for one batch tile.

      r_i    = x_i @ [Wx_i | A_i] + feat_{i-1} @ [Wf_i | Bm_i] + [bc_i | cf_i]
      pd_i   = r_i[:, :nc_pad]                      (stored, lane-dense)
      feat_i = relu(r_i[:, nc_pad:])                (i < nblocks-1)

    All contractions are over the backbone channel dim (K = C); the merged RHS
    is 256 lanes wide (nc_pad + C)."""
    feat = None
    for i in range(nblocks):
        x = x_ref[i]                                              # (tb, C)
        if i < nblocks - 1:
            r = jnp.dot(x, wxa_ref[i], preferred_element_type=jnp.float32)
            r = r + bias_ref[i]
            if i > 0:
                r = r + jnp.dot(feat, wfbm_ref[i - 1],
                                preferred_element_type=jnp.float32)
            out_ref[i] = r[:, :nc_pad].astype(out_ref.dtype)
            feat = jnp.maximum(r[:, nc_pad:], 0.0).astype(x.dtype)
        else:
            # Last block: feat-half is unused -> contract only the pd columns.
            r = jnp.dot(x, wxa_ref[i, :, :nc_pad],
                        preferred_element_type=jnp.float32)
            r = r + bias_ref[i, :, :nc_pad]
            r = r + jnp.dot(feat, wfbm_ref[i - 1, :, :nc_pad],
                            preferred_element_type=jnp.float32)
            out_ref[i] = r.astype(out_ref.dtype)


def _round_up(v, m):
    return ((v + m - 1) // m) * m


def imta_msdnet_heads(xs, clf_params, isc_params, num_classes,
                      batch_tile=512, compute_dtype=jnp.bfloat16,
                      out_dtype=jnp.float32):
    """xs: list of (B, C) per-block backbone feature vectors (equal widths,
    i.e. the non-ImageNet branch of the module).
    clf_params: [(W0, b0)] + [(Wa_i, Wb_i, b_i)] with (in, out)-layout matrices
    (the Wa/Wb split matches torch's cat([x, feat], -1) column order).
    isc_params: [(Lw, Lb, gamma, beta, running_mean, running_var)] per i < n-1.
    Returns a list of (B, num_classes) predictions pd_i."""
    nblocks = len(xs)
    assert nblocks >= 2, "cascade needs at least 2 blocks"
    B, C = xs[0].shape
    # TODO(synk): ImageNet branch has per-block channel widths; that would need
    # per-block (unstacked) feature inputs instead of one stacked array.
    assert all(x.shape == (B, C) for x in xs)

    f32 = jnp.float32
    hp = jax.lax.Precision.HIGHEST
    nc_pad = max(128, _round_up(num_classes, 128))
    nw = nc_pad + C                                      # merged RHS width

    # --- host-side algebra -------------------------------------------------
    # Fold eval-mode BatchNorm into the ISC linear: s = gamma * rsqrt(var+eps).
    Lw_f, Lb_f = [], []
    for (Lw, Lb, g, bt, mu, var) in isc_params:
        s = g.astype(f32) * jax.lax.rsqrt(var.astype(f32) + BN_EPS)   # (1, C)
        Lw_f.append(Lw.astype(f32) * s)                               # col scale
        Lb_f.append((Lb.astype(f32) - mu.astype(f32)) * s + bt.astype(f32))

    def padc(a):  # zero-pad the class dim so the pd half is lane-dense
        a = a.astype(f32)
        return jnp.pad(a, ((0, 0), (0, nc_pad - num_classes)))

    # Merged per-block weights / biases:
    #   WxA[i]  = [pad(Wx_i)  | A_i ]   A_i  = Wx_i @ Lw'_i   (zeros for last)
    #   WfBm[j] = [pad(Wf_i)  | Bm_i]   Bm_i = Wf_i @ Lw'_i   (j = i-1, i >= 1)
    #   bias[i] = [pad(bc_i)  | cf_i]   cf_i = b_i @ Lw'_i + Lb'_i
    WxA, WfBm, bias = [], [], []
    for i in range(nblocks):
        if i == 0:
            Wx, b = clf_params[0]
            Wf = None
        else:
            Wx, Wf, b = clf_params[i]
        Wx = Wx.astype(f32)
        b = b.astype(f32)
        if i < nblocks - 1:
            A_i = jnp.dot(Wx, Lw_f[i], precision=hp)
            cf_i = jnp.dot(b, Lw_f[i], precision=hp) + Lb_f[i]
        else:
            A_i = jnp.zeros((C, C), f32)          # feat-half never contracted
            cf_i = jnp.zeros((1, C), f32)
        WxA.append(jnp.concatenate([padc(Wx), A_i], axis=1))
        bias.append(jnp.concatenate([padc(b), cf_i], axis=1))
        if i > 0:
            Wf = Wf.astype(f32)
            if i < nblocks - 1:
                Bm_i = jnp.dot(Wf, Lw_f[i], precision=hp)
            else:
                Bm_i = jnp.zeros((C, C), f32)     # feat-half never contracted
            WfBm.append(jnp.concatenate([padc(Wf), Bm_i], axis=1))

    WxA = jnp.stack(WxA).astype(compute_dtype)    # (n,   C, nw)
    WfBm = jnp.stack(WfBm).astype(compute_dtype)  # (n-1, C, nw)
    bias = jnp.stack(bias)                        # (n,   1, nw) f32
    X = jnp.stack(xs).astype(compute_dtype)       # (n,   B, C)

    # --- pallas call --------------------------------------------------------
    if B > batch_tile:
        tb = batch_tile
    else:
        # Split into >= 2 grid steps when possible so both v7x TCs get work
        # (neutral on single-TC v5e/v6e); tiles stay multiples of 8 sublanes.
        tb = min(B, max(8, _round_up(pl.cdiv(B, 2), 8)))
    grid = (pl.cdiv(B, tb),)

    def const_spec(shape):
        return pl.BlockSpec(shape, lambda b: (0,) * len(shape))

    in_specs = [
        pl.BlockSpec((nblocks, tb, C), lambda b: (0, b, 0)),      # X
        const_spec((nblocks, C, nw)),                             # WxA
        const_spec((nblocks - 1, C, nw)),                         # WfBm
        const_spec((nblocks, 1, nw)),                             # bias
    ]
    out_specs = pl.BlockSpec((nblocks, tb, nc_pad), lambda b: (0, b, 0))
    out_shape = jax.ShapeDtypeStruct((nblocks, B, nc_pad), out_dtype)

    kernel = functools.partial(_cascade_kernel, nblocks, nc_pad)
    P = pl.pallas_call(
        kernel,
        grid=grid,
        in_specs=in_specs,
        out_specs=out_specs,
        out_shape=out_shape,
        compiler_params=pltpu.CompilerParams(
            dimension_semantics=("parallel",)),
    )(X, WxA, WfBm, bias)

    return [P[i, :, :num_classes].astype(f32) for i in range(nblocks)]


def _reference(xs, clf_params, isc_params):
    """Plain-JAX reference mirroring the torch forward (eval mode)."""
    hp = jax.lax.Precision.HIGHEST
    preds = []
    feat = None
    for i, x in enumerate(xs):
        if i == 0:
            W, b = clf_params[0]
            pd = jnp.dot(x, W, precision=hp) + b
        else:
            Wa, Wb, b = clf_params[i]
            pd = jnp.dot(jnp.concatenate([x, feat], axis=-1),
                         jnp.concatenate([Wa, Wb], axis=0), precision=hp) + b
        preds.append(pd)
        if i < len(xs) - 1:
            Lw, Lb, g, bt, mu, var = isc_params[i]
            h = jnp.dot(pd, Lw, precision=hp) + Lb
            h = (h - mu) / jnp.sqrt(var + BN_EPS) * g + bt
            feat = jnp.maximum(h, 0.0)
    return preds


if __name__ == "__main__":
    # Small config consistent with the non-ImageNet branch of the module:
    # logits_channels[i] == 128 for every block.
    nBlocks = 3
    num_classes = 16
    B = 8
    C = 128

    keys = iter(jax.random.split(jax.random.PRNGKey(0), 64))
    nxt = lambda: next(keys)

    # Backbone per-block pooled feature vectors (stand-in for msdnet_ge outputs).
    xs = [jax.random.normal(nxt(), (B, C), jnp.float32) * 0.5 for _ in range(nBlocks)]

    # Classifier params (Linear stored as (in, out)).
    clf_params = []
    W0 = jax.random.normal(nxt(), (C, num_classes), jnp.float32) * 0.05
    b0 = jax.random.normal(nxt(), (1, num_classes), jnp.float32) * 0.05
    clf_params.append((W0, b0))
    for _ in range(1, nBlocks):
        Wa = jax.random.normal(nxt(), (C, num_classes), jnp.float32) * 0.05
        Wb = jax.random.normal(nxt(), (C, num_classes), jnp.float32) * 0.05
        b = jax.random.normal(nxt(), (1, num_classes), jnp.float32) * 0.05
        clf_params.append((Wa, Wb, b))

    # ISC modules: Linear(num_classes -> C) + BatchNorm1d(C) (eval stats) + ReLU.
    isc_params = []
    for _ in range(nBlocks - 1):
        Lw = jax.random.normal(nxt(), (num_classes, C), jnp.float32) * 0.1
        Lb = jax.random.normal(nxt(), (1, C), jnp.float32) * 0.1
        gamma = 1.0 + 0.1 * jax.random.normal(nxt(), (1, C), jnp.float32)
        beta = 0.1 * jax.random.normal(nxt(), (1, C), jnp.float32)
        mean = 0.1 * jax.random.normal(nxt(), (1, C), jnp.float32)
        var = 0.5 + jax.random.uniform(nxt(), (1, C), jnp.float32)
        isc_params.append((Lw, Lb, gamma, beta, mean, var))

    refs = _reference(xs, clf_params, isc_params)

    # 1) f32-compute path: validates the BN fold / weight-merge algebra tightly.
    preds_f32 = imta_msdnet_heads(xs, clf_params, isc_params, num_classes,
                                  compute_dtype=jnp.float32)
    preds_f32 = jax.block_until_ready(preds_f32)
    for p, r in zip(preds_f32, refs):
        assert p.shape == (B, num_classes)
        if not jnp.allclose(p, r, atol=1e-4, rtol=1e-4):
            raise AssertionError("Pallas kernel (f32) output mismatch vs reference")

    # 2) default fast path: bf16 MXU inputs, f32 accumulation (looser tolerance).
    preds = imta_msdnet_heads(xs, clf_params, isc_params, num_classes)
    preds = jax.block_until_ready(preds)
    for p, r in zip(preds, refs):
        assert p.shape == (B, num_classes)
        if not jnp.allclose(p, r, atol=3e-2, rtol=3e-2):
            raise AssertionError("Pallas kernel (bf16) output mismatch vs reference")

    print("KERNEL_OK")
</pallas_src>

<mosaic_0001>
module attributes {stable_mosaic.version = 11 : i64} {
  func.func @_cascade_kernel(%arg0: i32, %arg1: memref<3x8x128xf32, #tpu.memory_space<vmem>>, %arg2: memref<3x128x256xf32, #tpu.memory_space<vmem>>, %arg3: memref<2x128x256xf32, #tpu.memory_space<vmem>>, %arg4: memref<3x1x256xf32, #tpu.memory_space<vmem>>, %arg5: memref<3x8x128xf32, #tpu.memory_space<vmem>>) attributes {dimension_semantics = [#tpu.dimension_semantics<parallel>], iteration_bounds = array<i64: 1>, scalar_prefetch = 0 : i64, scratch_operands = 0 : i64, tpu.core_type = #tpu.core_type<tc>, window_params = [{transform_indices = @transform_0, window_bounds = array<i64: 3, 8, 128>}, {pipeline_mode = #tpu.pipeline_mode<synchronous>, transform_indices = @transform_1, window_bounds = array<i64: 3, 128, 256>}, {pipeline_mode = #tpu.pipeline_mode<synchronous>, transform_indices = @transform_2, window_bounds = array<i64: 2, 128, 256>}, {pipeline_mode = #tpu.pipeline_mode<synchronous>, transform_indices = @transform_3, window_bounds = array<i64: 3, 1, 256>}, {transform_indices = @transform_4, window_bounds = array<i64: 3, 8, 128>}]} {
    %c0 = arith.constant 0 : index
    %c0_0 = arith.constant 0 : index
    %c0_1 = arith.constant 0 : index
    %0 = vector.load %arg1[%c0, %c0_0, %c0_1] : memref<3x8x128xf32, #tpu.memory_space<vmem>>, vector<1x8x128xf32>
    %1 = vector.shape_cast %0 : vector<1x8x128xf32> to vector<8x128xf32>
    %c0_2 = arith.constant 0 : index
    %c0_3 = arith.constant 0 : index
    %c0_4 = arith.constant 0 : index
    %2 = vector.load %arg2[%c0_2, %c0_3, %c0_4] : memref<3x128x256xf32, #tpu.memory_space<vmem>>, vector<1x128x256xf32>
    %3 = vector.shape_cast %2 : vector<1x128x256xf32> to vector<128x256xf32>
    %cst = arith.constant dense<0.000000e+00> : vector<8x256xf32>
    %4 = tpu.matmul %1, %3, %cst {dimension_numbers = #tpu.dot_dimension_numbers<[1], [0], [0], [1], [0, 0, 1, 1], [], []>} : vector<8x128xf32>, vector<128x256xf32>, vector<8x256xf32> -> vector<8x256xf32>
    %c0_5 = arith.constant 0 : index
    %c0_6 = arith.constant 0 : index
    %c0_7 = arith.constant 0 : index
    %5 = vector.load %arg4[%c0_5, %c0_6, %c0_7] : memref<3x1x256xf32, #tpu.memory_space<vmem>>, vector<1x1x256xf32>
    %6 = vector.shape_cast %5 : vector<1x1x256xf32> to vector<1x256xf32>
    %7 = vector.broadcast %6 : vector<1x256xf32> to vector<8x256xf32>
    %8 = arith.addf %4, %7 : vector<8x256xf32>
    %9 = vector.extract_strided_slice %8 {offsets = [0, 0], sizes = [8, 128], strides = [1, 1]} : vector<8x256xf32> to vector<8x128xf32>
    %c0_8 = arith.constant 0 : index
    %c0_9 = arith.constant 0 : index
    %c0_10 = arith.constant 0 : index
    %10 = vector.load %arg5[%c0_8, %c0_9, %c0_10] : memref<3x8x128xf32, #tpu.memory_space<vmem>>, vector<1x8x128xf32>
    %11 = vector.shape_cast %10 : vector<1x8x128xf32> to vector<8x128xf32>
    %12 = vector.shape_cast %9 : vector<8x128xf32> to vector<1x8x128xf32>
    tpu.vector_store %arg5[%c0_8, %c0_9, %c0_10], %12 {strides = array<i32>} : memref<3x8x128xf32, #tpu.memory_space<vmem>>, vector<1x8x128xf32>,
    %13 = vector.extract_strided_slice %8 {offsets = [0, 128], sizes = [8, 128], strides = [1, 1]} : vector<8x256xf32> to vector<8x128xf32>
    %cst_11 = arith.constant 0.000000e+00 : f32
    %14 = vector.broadcast %cst_11 : f32 to vector<8x128xf32>
    %15 = arith.maximumf %13, %14 : vector<8x128xf32>
    %c1 = arith.constant 1 : index
    %c0_12 = arith.constant 0 : index
    %c0_13 = arith.constant 0 : index
    %16 = vector.load %arg1[%c1, %c0_12, %c0_13] : memref<3x8x128xf32, #tpu.memory_space<vmem>>, vector<1x8x128xf32>
    %17 = vector.shape_cast %16 : vector<1x8x128xf32> to vector<8x128xf32>
    %c1_14 = arith.constant 1 : index
    %c0_15 = arith.constant 0 : index
    %c0_16 = arith.constant 0 : index
    %18 = vector.load %arg2[%c1_14, %c0_15, %c0_16] : memref<3x128x256xf32, #tpu.memory_space<vmem>>, vector<1x128x256xf32>
    %19 = vector.shape_cast %18 : vector<1x128x256xf32> to vector<128x256xf32>
    %cst_17 = arith.constant dense<0.000000e+00> : vector<8x256xf32>
    %20 = tpu.matmul %17, %19, %cst_17 {dimension_numbers = #tpu.dot_dimension_numbers<[1], [0], [0], [1], [0, 0, 1, 1], [], []>} : vector<8x128xf32>, vector<128x256xf32>, vector<8x256xf32> -> vector<8x256xf32>
    %c1_18 = arith.constant 1 : index
    %c0_19 = arith.constant 0 : index
    %c0_20 = arith.constant 0 : index
    %21 = vector.load %arg4[%c1_18, %c0_19, %c0_20] : memref<3x1x256xf32, #tpu.memory_space<vmem>>, vector<1x1x256xf32>
    %22 = vector.shape_cast %21 : vector<1x1x256xf32> to vector<1x256xf32>
    %23 = vector.broadcast %22 : vector<1x256xf32> to vector<8x256xf32>
    %24 = arith.addf %20, %23 : vector<8x256xf32>
    %c0_21 = arith.constant 0 : index
    %c0_22 = arith.constant 0 : index
    %c0_23 = arith.constant 0 : index
    %25 = vector.load %arg3[%c0_21, %c0_22, %c0_23] : memref<2x128x256xf32, #tpu.memory_space<vmem>>, vector<1x128x256xf32>
    %26 = vector.shape_cast %25 : vector<1x128x256xf32> to vector<128x256xf32>
    %cst_24 = arith.constant dense<0.000000e+00> : vector<8x256xf32>
    %27 = tpu.matmul %15, %26, %cst_24 {dimension_numbers = #tpu.dot_dimension_numbers<[1], [0], [0], [1], [0, 0, 1, 1], [], []>} : vector<8x128xf32>, vector<128x256xf32>, vector<8x256xf32> -> vector<8x256xf32>
    %28 = arith.addf %24, %27 : vector<8x256xf32>
    %29 = vector.extract_strided_slice %28 {offsets = [0, 0], sizes = [8, 128], strides = [1, 1]} : vector<8x256xf32> to vector<8x128xf32>
    %c1_25 = arith.constant 1 : index
    %c0_26 = arith.constant 0 : index
    %c0_27 = arith.constant 0 : index
    %30 = vector.load %arg5[%c1_25, %c0_26, %c0_27] : memref<3x8x128xf32, #tpu.memory_space<vmem>>, vector<1x8x128xf32>
    %31 = vector.shape_cast %30 : vector<1x8x128xf32> to vector<8x128xf32>
    %32 = vector.shape_cast %29 : vector<8x128xf32> to vector<1x8x128xf32>
    tpu.vector_store %arg5[%c1_25, %c0_26, %c0_27], %32 {strides = array<i32>} : memref<3x8x128xf32, #tpu.memory_space<vmem>>, vector<1x8x128xf32>,
    %33 = vector.extract_strided_slice %28 {offsets = [0, 128], sizes = [8, 128], strides = [1, 1]} : vector<8x256xf32> to vector<8x128xf32>
    %cst_28 = arith.constant 0.000000e+00 : f32
    %34 = vector.broadcast %cst_28 : f32 to vector<8x128xf32>
    %35 = arith.maximumf %33, %34 : vector<8x128xf32>
    %c2 = arith.constant 2 : index
    %c0_29 = arith.constant 0 : index
    %c0_30 = arith.constant 0 : index
    %36 = vector.load %arg1[%c2, %c0_29, %c0_30] : memref<3x8x128xf32, #tpu.memory_space<vmem>>, vector<1x8x128xf32>
    %37 = vector.shape_cast %36 : vector<1x8x128xf32> to vector<8x128xf32>
    %c2_31 = arith.constant 2 : index
    %c0_32 = arith.constant 0 : index
    %c0_33 = arith.constant 0 : index
    %38 = vector.load %arg2[%c2_31, %c0_32, %c0_33] : memref<3x128x256xf32, #tpu.memory_space<vmem>>, vector<1x128x128xf32>
    %39 = vector.shape_cast %38 : vector<1x128x128xf32> to vector<128x128xf32>
    %cst_34 = arith.constant dense<0.000000e+00> : vector<8x128xf32>
    %40 = tpu.matmul %37, %39, %cst_34 {dimension_numbers = #tpu.dot_dimension_numbers<[1], [0], [0], [1], [0, 0, 1, 1], [], []>} : vector<8x128xf32>, vector<128x128xf32>, vector<8x128xf32> -> vector<8x128xf32>
    %c2_35 = arith.constant 2 : index
    %c0_36 = arith.constant 0 : index
    %c0_37 = arith.constant 0 : index
    %41 = vector.load %arg4[%c2_35, %c0_36, %c0_37] : memref<3x1x256xf32, #tpu.memory_space<vmem>>, vector<1x1x128xf32>
    %42 = vector.shape_cast %41 : vector<1x1x128xf32> to vector<1x128xf32>
    %43 = vector.broadcast %42 : vector<1x128xf32> to vector<8x128xf32>
    %44 = arith.addf %40, %43 : vector<8x128xf32>
    %c1_38 = arith.constant 1 : index
    %c0_39 = arith.constant 0 : index
    %c0_40 = arith.constant 0 : index
    %45 = vector.load %arg3[%c1_38, %c0_39, %c0_40] : memref<2x128x256xf32, #tpu.memory_space<vmem>>, vector<1x128x128xf32>
    %46 = vector.shape_cast %45 : vector<1x128x128xf32> to vector<128x128xf32>
    %cst_41 = arith.constant dense<0.000000e+00> : vector<8x128xf32>
    %47 = tpu.matmul %35, %46, %cst_41 {dimension_numbers = #tpu.dot_dimension_numbers<[1], [0], [0], [1], [0, 0, 1, 1], [], []>} : vector<8x128xf32>, vector<128x128xf32>, vector<8x128xf32> -> vector<8x128xf32>
    %48 = arith.addf %44, %47 : vector<8x128xf32>
    %c2_42 = arith.constant 2 : index
    %c0_43 = arith.constant 0 : index
    %c0_44 = arith.constant 0 : index
    %49 = vector.load %arg5[%c2_42, %c0_43, %c0_44] : memref<3x8x128xf32, #tpu.memory_space<vmem>>, vector<1x8x128xf32>
    %50 = vector.shape_cast %49 : vector<1x8x128xf32> to vector<8x128xf32>
    %51 = vector.shape_cast %48 : vector<8x128xf32> to vector<1x8x128xf32>
    tpu.vector_store %arg5[%c2_42, %c0_43, %c0_44], %51 {strides = array<i32>} : memref<3x8x128xf32, #tpu.memory_space<vmem>>, vector<1x8x128xf32>,
    return
  }
  func.func @transform_0(%arg0: i32) -> (i32, i32, i32) {
    %c0_i32 = arith.constant 0 : i32
    %c0_i32_0 = arith.constant 0 : i32
    %c0_i32_1 = arith.constant 0 : i32
    return %c0_i32, %arg0, %c0_i32_0 : i32, i32, i32
  }
  func.func @transform_1(%arg0: i32) -> (i32, i32, i32) {
    %c0_i32 = arith.constant 0 : i32
    %c0_i32_0 = arith.constant 0 : i32
    %c0_i32_1 = arith.constant 0 : i32
    %c0_i32_2 = arith.constant 0 : i32
    return %c0_i32, %c0_i32_0, %c0_i32_1 : i32, i32, i32
  }
  func.func @transform_2(%arg0: i32) -> (i32, i32, i32) {
    %c0_i32 = arith.constant 0 : i32
    %c0_i32_0 = arith.constant 0 : i32
    %c0_i32_1 = arith.constant 0 : i32
    %c0_i32_2 = arith.constant 0 : i32
    return %c0_i32, %c0_i32_0, %c0_i32_1 : i32, i32, i32
  }
  func.func @transform_3(%arg0: i32) -> (i32, i32, i32) {
    %c0_i32 = arith.constant 0 : i32
    %c0_i32_0 = arith.constant 0 : i32
    %c0_i32_1 = arith.constant 0 : i32
    %c0_i32_2 = arith.constant 0 : i32
    return %c0_i32, %c0_i32_0, %c0_i32_1 : i32, i32, i32
  }
  func.func @transform_4(%arg0: i32) -> (i32, i32, i32) {
    %c0_i32 = arith.constant 0 : i32
    %c0_i32_0 = arith.constant 0 : i32
    %c0_i32_1 = arith.constant 0 : i32
    return %c0_i32, %arg0, %c0_i32_0 : i32, i32, i32
  }
}

</mosaic_0001>

<llo_original>
// kernel: tpu_custom_call.1
$region0: #{tpu_custom_call.1}
  #allocation0 [shape = 'u32[]', space=smem, size = 0x4, offset = 0x4, fixed_abs, tag = 'smem constant byte address 0x4 - core index']
  #allocation1 [shape = 'u32[144,128]{1,0:T(1,128)}', space=vmem, size = 0x12000, scoped, tag = 'internal scratch']
  %s0 = inlined_call_operand.hbm [shape: f32[3,8,128], index: 0, kind: input, shape index: {}]
  %s1 = inlined_call_operand.hbm [shape: f32[3,128,256], index: 1, kind: input, shape index: {}]
  %s2 = inlined_call_operand.hbm [shape: f32[2,128,256], index: 2, kind: input, shape index: {}]
  %s3 = inlined_call_operand.hbm [shape: f32[3,1,256], index: 3, kind: input, shape index: {}]
  %s4 = inlined_call_operand.hbm [shape: f32[3,8,128], index: 4, kind: output, shape index: {}]
  %s5 = sld [smem:[#allocation0]]
  $region42: #{tpu_custom_call.1} parent=0
    _
  %s7 = ssub.s32 1, %s5
  %s8 = scalar_select 0, %s7, %s5
  $region1: #{tpu_custom_call.1} parent=0
    #allocation2 [shape = 'u8[12288]{0}', space=vmem, size = 0x3000, scoped, tag = 'input window, operand 0, single buffered']
    #allocation3 [shape = 's32[1]{0}', space=sflag, size = 0x4, scoped, tag = 'scoped memory for tpu_custom_call.1']
    #allocation4 [shape = 's32[1]{0}', space=sflag, size = 0x4, scoped, tag = 'scoped memory for tpu_custom_call.1']
    #allocation5 [shape = 'u8[393216]{0}', space=vmem, size = 0x60000, scoped, tag = 'input window, operand 1, single buffered']
    #allocation6 [shape = 's32[1]{0}', space=sflag, size = 0x4, scoped, tag = 'scoped memory for tpu_custom_call.1']
    #allocation7 [shape = 'u8[262144]{0}', space=vmem, size = 0x40000, scoped, tag = 'input window, operand 2, single buffered']
    #allocation8 [shape = 'u8[3072]{0}', space=vmem, size = 0xc00, scoped, tag = 'input window, operand 3, single buffered']
    #allocation9 [shape = 's32[1]{0}', space=sflag, size = 0x4, scoped, tag = 'scoped memory for tpu_custom_call.1']
    #allocation10 [shape = 'u8[12288]{0}', space=vmem, size = 0x3000, scoped, tag = 'output window, operand 0, single buffered']
    %9 = vsyncpa [#allocation3], 0
    %10 = vsyncpa [#allocation6], 0
    %11 = vsyncpa [#allocation9], 0
    %12 = vsyncpa [#allocation4], 0
    // Predicated region
    $region2: #{tpu_custom_call.1} parent=1 // pred_check
      _
    $region3: #{tpu_custom_call.1} parent=1 // pred_check_branch
      %14 = sbr.rel (0) target = $region5
    $region4: #{tpu_custom_call.1} parent=1 // pred_region
      %s16 = ssub.s32 384, 384
      %17 = vsyncadd [#allocation3], %s16
      %s18 = sshll.u32 [#allocation2], 4
      %s19 = int_to_ptr.vmem [resolvable:$true] %s18
      %24 = dma.hbm_to_vmem [thread:$0]  %s0, 384, %s19, [#allocation3], 128, 128, 8
    $region5: #{tpu_custom_call.1} parent=1 // pred_fallthru
      _
    // Predicated region
    $region6: #{tpu_custom_call.1} parent=1 // pred_check
      _
    $region7: #{tpu_custom_call.1} parent=1 // pred_check_branch
      %26 = sbr.rel (0) target = $region9
    $region8: #{tpu_custom_call.1} parent=1 // pred_region
      %s28 = ssub.s32 12288, 12288
      %29 = vsyncadd [#allocation6], %s28
      %s30 = sshll.u32 [#allocation5], 4
      %s31 = int_to_ptr.vmem [resolvable:$true] %s30
      %36 = dma.hbm_to_vmem [thread:$0]  %s1, 12288, %s31, [#allocation6], 256, 256, 16
    $region9: #{tpu_custom_call.1} parent=1 // pred_fallthru
      _
    // Predicated region
    $region10: #{tpu_custom_call.1} parent=1 // pred_check
      _
    $region11: #{tpu_custom_call.1} parent=1 // pred_check_branch
      %38 = sbr.rel (0) target = $region13
    $region12: #{tpu_custom_call.1} parent=1 // pred_region
      %s40 = ssub.s32 8192, 8192
      %41 = vsyncadd [#allocation6], %s40
      %s42 = sshll.u32 [#allocation7], 4
      %s43 = int_to_ptr.vmem [resolvable:$true] %s42
      %48 = dma.hbm_to_vmem [thread:$0]  %s2, 8192, %s43, [#allocation6], 256, 256, 16
    $region13: #{tpu_custom_call.1} parent=1 // pred_fallthru
      _
    // Predicated region
    $region14: #{tpu_custom_call.1} parent=1 // pred_check
      _
    $region15: #{tpu_custom_call.1} parent=1 // pred_check_branch
      %50 = sbr.rel (0) target = $region17
    $region16: #{tpu_custom_call.1} parent=1 // pred_region
      %s52 = ssub.s32 96, 96
      %53 = vsyncadd [#allocation9], %s52
      %s54 = sshll.u32 [#allocation8], 4
      %s55 = int_to_ptr.vmem [resolvable:$true] %s54
      %60 = dma.hbm_to_vmem [thread:$0]  %s3, 96, %s55, [#allocation9], 32, 32, 2
    $region17: #{tpu_custom_call.1} parent=1 // pred_fallthru
      _
    // Predicated region
    $region18: #{tpu_custom_call.1} parent=1 // pred_check
      _
    $region19: #{tpu_custom_call.1} parent=1 // pred_check_branch
      %62 = sbr.rel (0) target = $region21
    $region20: #{tpu_custom_call.1} parent=1 // pred_region
      %63 = dma.done [#allocation3], 384
    $region21: #{tpu_custom_call.1} parent=1 // pred_fallthru
      _
    // Predicated region
    $region22: #{tpu_custom_call.1} parent=1 // pred_check
      _
    $region23: #{tpu_custom_call.1} parent=1 // pred_check_branch
      %65 = sbr.rel (0) target = $region25
    $region24: #{tpu_custom_call.1} parent=1 // pred_region
      %66 = dma.done [#allocation6], 12288
    $region25: #{tpu_custom_call.1} parent=1 // pred_fallthru
      _
    // Predicated region
    $region26: #{tpu_custom_call.1} parent=1 // pred_check
      _
    $region27: #{tpu_custom_call.1} parent=1 // pred_check_branch
      %68 = sbr.rel (0) target = $region29
    $region28: #{tpu_custom_call.1} parent=1 // pred_region
      %69 = dma.done [#allocation6], 8192
    $region29: #{tpu_custom_call.1} parent=1 // pred_fallthru
      _
    // Predicated region
    $region30: #{tpu_custom_call.1} parent=1 // pred_check
      _
    $region31: #{tpu_custom_call.1} parent=1 // pred_check_branch
      %71 = sbr.rel (0) target = $region33
    $region32: #{tpu_custom_call.1} parent=1 // pred_region
      %72 = dma.done [#allocation9], 96
    $region33: #{tpu_custom_call.1} parent=1 // pred_fallthru
      _
    %v73 = vld [vmem:[#allocation2] sm:$0xff]
    %v74 = vld [vmem:[#allocation5] sm:$0xff]
    %v75 = vld [vmem:[#allocation5 + $0x8] sm:$0xff]
    %v76 = vld [vmem:[#allocation5 + $0x10] sm:$0xff]
    %v77 = vld [vmem:[#allocation5 + $0x18] sm:$0xff]
    %v78 = vld [vmem:[#allocation5 + $0x20] sm:$0xff]
    %v79 = vld [vmem:[#allocation5 + $0x28] sm:$0xff]
    %v80 = vld [vmem:[#allocation5 + $0x30] sm:$0xff]
    %v81 = vld [vmem:[#allocation5 + $0x38] sm:$0xff]
    %v82 = vld [vmem:[#allocation5 + $0x40] sm:$0xff]
    %v83 = vld [vmem:[#allocation5 + $0x48] sm:$0xff]
    %v84 = vld [vmem:[#allocation5 + $0x50] sm:$0xff]
    %v85 = vld [vmem:[#allocation5 + $0x58] sm:$0xff]
    %v86 = vld [vmem:[#allocation5 + $0x60] sm:$0xff]
    %v87 = vld [vmem:[#allocation5 + $0x68] sm:$0xff]
    %v88 = vld [vmem:[#allocation5 + $0x70] sm:$0xff]
    %v89 = vld [vmem:[#allocation5 + $0x78] sm:$0xff]
    %v90 = vld [vmem:[#allocation5 + $0x80] sm:$0xff]
    %v91 = vld [vmem:[#allocation5 + $0x88] sm:$0xff]
    %v92 = vld [vmem:[#allocation5 + $0x90] sm:$0xff]
    %v93 = vld [vmem:[#allocation5 + $0x98] sm:$0xff]
    %v94 = vld [vmem:[#allocation5 + $0xa0] sm:$0xff]
    %v95 = vld [vmem:[#allocation5 + $0xa8] sm:$0xff]
    %v96 = vld [vmem:[#allocation5 + $0xb0] sm:$0xff]
    %v97 = vld [vmem:[#allocation5 + $0xb8] sm:$0xff]
    %v98 = vld [vmem:[#allocation5 + $0xc0] sm:$0xff]
    %v99 = vld [vmem:[#allocation5 + $0xc8] sm:$0xff]
    %v100 = vld [vmem:[#allocation5 + $0xd0] sm:$0xff]
    %v101 = vld [vmem:[#allocation5 + $0xd8] sm:$0xff]
    %v102 = vld [vmem:[#allocation5 + $0xe0] sm:$0xff]
    %v103 = vld [vmem:[#allocation5 + $0xe8] sm:$0xff]
    %v104 = vld [vmem:[#allocation5 + $0xf0] sm:$0xff]
    %v105 = vld [vmem:[#allocation5 + $0xf8] sm:$0xff]
    %v106 = vld [vmem:[#allocation8] sm:$0x3]
    %v108 = vlaneseq
    %v109 = vshrl.u32 %v108, 7
    %v110 = vsub.s32 0, %v109
    %v111 = vrot.slane %v106, %v110
    %v112 = vlaneseq
    %v113 = vshrl.u32 %v112, 7
    %v114 = vsub.s32 1, %v113
    %v115 = vrot.slane %v106, %v114
    %118 = vmatprep.subr.mxu0 %v105
    %119 = vmatpush1.msra.mxu0 %v104
    %120 = vmatprep.subr.mxu0 %v103
    %121 = vmatpush1.msra.mxu0 %v102
    %122 = vmatprep.subr.mxu0 %v101
    %123 = vmatpush1.msra.mxu0 %v100
    %124 = vmatprep.subr.mxu0 %v99
    %125 = vmatpush1.msra.mxu0 %v98
    %126 = vmatprep.subr.mxu0 %v97
    %127 = vmatpush1.msra.mxu0 %v96
    %128 = vmatprep.subr.mxu0 %v95
    %129 = vmatpush1.msra.mxu0 %v94
    %130 = vmatprep.subr.mxu0 %v93
    %131 = vmatpush1.msra.mxu0 %v92
    %132 = vmatprep.subr.mxu0 %v91
    %133 = vmatpush1.msra.mxu0 %v90
    %134 = vmatprep.subr.mxu0 %v89
    %135 = vmatpush1.msra.mxu0 %v88
    %136 = vmatprep.subr.mxu0 %v87
    %137 = vmatpush1.msra.mxu0 %v86
    %138 = vmatprep.subr.mxu0 %v85
    %139 = vmatpush1.msra.mxu0 %v84
    %140 = vmatprep.subr.mxu0 %v83
    %141 = vmatpush1.msra.mxu0 %v82
    %142 = vmatprep.subr.mxu0 %v81
    %143 = vmatpush1.msra.mxu0 %v80
    %144 = vmatprep.subr.mxu0 %v79
    %145 = vmatpush1.msra.mxu0 %v78
    %146 = vmatprep.subr.mxu0 %v77
    %147 = vmatpush1.msra.mxu0 %v76
    %148 = vmatprep.subr.mxu0 %v75
    %149 = vmatpush1.msra.mxu0 %v74
    %150 = vmatprep.subr.mxu0 0.0
    %151 = vmatpush2.msra.mxu0 0.0
    %152 = vmatprep.subr.mxu0 0.0
    %153 = vmatpush2.msra.mxu0 0.0
    %154 = vmatprep.subr.mxu0 0.0
    %155 = vmatpush2.msra.mxu0 0.0
    %156 = vmatprep.subr.mxu0 0.0
    %157 = vmatpush2.msra.mxu0 0.0
    %158 = vmatprep.subr.mxu0 0.0
    %159 = vmatpush2.msra.mxu0 0.0
    %160 = vmatprep.subr.mxu0 0.0
    %161 = vmatpush2.msra.mxu0 0.0
    %162 = vmatprep.subr.mxu0 0.0
    %163 = vmatpush2.msra.mxu0 0.0
    %164 = vmatprep.subr.mxu0 0.0
    %165 = vmatpush2.msra.mxu0 0.0
    %166 = vmatprep.subr.mxu0 0.0
    %167 = vmatpush2.msra.mxu0 0.0
    %168 = vmatprep.subr.mxu0 0.0
    %169 = vmatpush2.msra.mxu0 0.0
    %170 = vmatprep.subr.mxu0 0.0
    %171 = vmatpush2.msra.mxu0 0.0
    %172 = vmatprep.subr.mxu0 0.0
    %173 = vmatpush2.msra.mxu0 0.0
    %174 = vmatprep.subr.mxu0 0.0
    %175 = vmatpush2.msra.mxu0 0.0
    %176 = vmatprep.subr.mxu0 0.0
    %177 = vmatpush2.msra.mxu0 0.0
    %178 = vmatprep.subr.mxu0 0.0
    %179 = vmatpush2.msra.mxu0 0.0
    %180 = vmatprep.subr.mxu0 0.0
    %181 = vmatpush2.msra.mxu0 0.0
    %182 = vmatprep.mubr.f32.mxu0 0.0
    %183 = vmatmul.mubr.f32.gmra.mxu0 %v73
    %v184 = vpop.f32.mrf.mxu0
    %v185 = vadd.f32 %v111, %v184
    %v186 = vpop.f32.mrf.mxu0
    %v187 = vadd.f32 %v115, %v186
    %188 = vdwg.mxu0
    %189 = vst [vmem:[#allocation10] sm:$0xff] %v185
    %v190 = vmax.f32 %v187, 0.0
    %s191 = scalar_lea.vmem [#allocation2], 8
    %v192 = vld [vmem:[%s191] sm:$0xff]
    %s193 = scalar_lea.vmem [#allocation5], 256
    %v194 = vld [vmem:[%s193] sm:$0xff]
    %v195 = vld [vmem:[%s193 + $0x8] sm:$0xff]
    %v196 = vld [vmem:[%s193 + $0x10] sm:$0xff]
    %v197 = vld [vmem:[%s193 + $0x18] sm:$0xff]
    %v198 = vld [vmem:[%s193 + $0x20] sm:$0xff]
    %v199 = vld [vmem:[%s193 + $0x28] sm:$0xff]
    %v200 = vld [vmem:[%s193 + $0x30] sm:$0xff]
    %v201 = vld [vmem:[%s193 + $0x38] sm:$0xff]
    %v202 = vld [vmem:[%s193 + $0x40] sm:$0xff]
    %v203 = vld [vmem:[%s193 + $0x48] sm:$0xff]
    %v204 = vld [vmem:[%s193 + $0x50] sm:$0xff]
    %v205 = vld [vmem:[%s193 + $0x58] sm:$0xff]
    %v206 = vld [vmem:[%s193 + $0x60] sm:$0xff]
    %v207 = vld [vmem:[%s193 + $0x68] sm:$0xff]
    %v208 = vld [vmem:[%s193 + $0x70] sm:$0xff]
    %v209 = vld [vmem:[%s193 + $0x78] sm:$0xff]
    %v210 = vld [vmem:[%s193 + $0x80] sm:$0xff]
    %v211 = vld [vmem:[%s193 + $0x88] sm:$0xff]
    %v212 = vld [vmem:[%s193 + $0x90] sm:$0xff]
    %v213 = vld [vmem:[%s193 + $0x98] sm:$0xff]
    %v214 = vld [vmem:[%s193 + $0xa0] sm:$0xff]
    %v215 = vld [vmem:[%s193 + $0xa8] sm:$0xff]
    %v216 = vld [vmem:[%s193 + $0xb0] sm:$0xff]
    %v217 = vld [vmem:[%s193 + $0xb8] sm:$0xff]
    %v218 = vld [vmem:[%s193 + $0xc0] sm:$0xff]
    %v219 = vld [vmem:[%s193 + $0xc8] sm:$0xff]
    %v220 = vld [vmem:[%s193 + $0xd0] sm:$0xff]
    %v221 = vld [vmem:[%s193 + $0xd8] sm:$0xff]
    %v222 = vld [vmem:[%s193 + $0xe0] sm:$0xff]
    %v223 = vld [vmem:[%s193 + $0xe8] sm:$0xff]
    %v224 = vld [vmem:[%s193 + $0xf0] sm:$0xff]
    %v225 = vld [vmem:[%s193 + $0xf8] sm:$0xff]
    %s226 = scalar_lea.vmem [#allocation8], 2
    %v227 = vld [vmem:[%s226] sm:$0x3]
    %v229 = vlaneseq
    %v230 = vshrl.u32 %v229, 7
    %v231 = vsub.s32 0, %v230
    %v232 = vrot.slane %v227, %v231
    %v233 = vlaneseq
    %v234 = vshrl.u32 %v233, 7
    %v235 = vsub.s32 1, %v234
    %v236 = vrot.slane %v227, %v235
    %239 = vmatprep.subr.mxu0 %v225
    %240 = vmatpush1.msra.mxu0 %v224
    %241 = vmatprep.subr.mxu0 %v223
    %242 = vmatpush1.msra.mxu0 %v222
    %243 = vmatprep.subr.mxu0 %v221
    %244 = vmatpush1.msra.mxu0 %v220
    %245 = vmatprep.subr.mxu0 %v219
    %246 = vmatpush1.msra.mxu0 %v218
    %247 = vmatprep.subr.mxu0 %v217
    %248 = vmatpush1.msra.mxu0 %v216
    %249 = vmatprep.subr.mxu0 %v215
    %250 = vmatpush1.msra.mxu0 %v214
    %251 = vmatprep.subr.mxu0 %v213
    %252 = vmatpush1.msra.mxu0 %v212
    %253 = vmatprep.subr.mxu0 %v211
    %254 = vmatpush1.msra.mxu0 %v210
    %255 = vmatprep.subr.mxu0 %v209
    %256 = vmatpush1.msra.mxu0 %v208
    %257 = vmatprep.subr.mxu0 %v207
    %258 = vmatpush1.msra.mxu0 %v206
    %259 = vmatprep.subr.mxu0 %v205
    %260 = vmatpush1.msra.mxu0 %v204
    %261 = vmatprep.subr.mxu0 %v203
    %262 = vmatpush1.msra.mxu0 %v202
    %263 = vmatprep.subr.mxu0 %v201
    %264 = vmatpush1.msra.mxu0 %v200
    %265 = vmatprep.subr.mxu0 %v199
    %266 = vmatpush1.msra.mxu0 %v198
    %267 = vmatprep.subr.mxu0 %v197
    %268 = vmatpush1.msra.mxu0 %v196
    %269 = vmatprep.subr.mxu0 %v195
    %270 = vmatpush1.msra.mxu0 %v194
    %271 = vmatprep.subr.mxu0 0.0
    %272 = vmatpush2.msra.mxu0 0.0
    %273 = vmatprep.subr.mxu0 0.0
    %274 = vmatpush2.msra.mxu0 0.0
    %275 = vmatprep.subr.mxu0 0.0
    %276 = vmatpush2.msra.mxu0 0.0
    %277 = vmatprep.subr.mxu0 0.0
    %278 = vmatpush2.msra.mxu0 0.0
    %279 = vmatprep.subr.mxu0 0.0
    %280 = vmatpush2.msra.mxu0 0.0
    %281 = vmatprep.subr.mxu0 0.0
    %282 = vmatpush2.msra.mxu0 0.0
    %283 = vmatprep.subr.mxu0 0.0
    %284 = vmatpush2.msra.mxu0 0.0
    %285 = vmatprep.subr.mxu0 0.0
    %286 = vmatpush2.msra.mxu0 0.0
    %287 = vmatprep.subr.mxu0 0.0
    %288 = vmatpush2.msra.mxu0 0.0
    %289 = vmatprep.subr.mxu0 0.0
    %290 = vmatpush2.msra.mxu0 0.0
    %291 = vmatprep.subr.mxu0 0.0
    %292 = vmatpush2.msra.mxu0 0.0
    %293 = vmatprep.subr.mxu0 0.0
    %294 = vmatpush2.msra.mxu0 0.0
    %295 = vmatprep.subr.mxu0 0.0
    %296 = vmatpush2.msra.mxu0 0.0
    %297 = vmatprep.subr.mxu0 0.0
    %298 = vmatpush2.msra.mxu0 0.0
    %299 = vmatprep.subr.mxu0 0.0
    %300 = vmatpush2.msra.mxu0 0.0
    %301 = vmatprep.subr.mxu0 0.0
    %302 = vmatpush2.msra.mxu0 0.0
    %303 = vmatprep.mubr.f32.mxu0 0.0
    %304 = vmatmul.mubr.f32.gmra.mxu0 %v192
    %v305 = vpop.f32.mrf.mxu0
    %v306 = vadd.f32 %v232, %v305
    %v307 = vpop.f32.mrf.mxu0
    %v308 = vadd.f32 %v236, %v307
    %309 = vdwg.mxu0
    %v310 = vld [vmem:[#allocation7] sm:$0xff]
    %v311 = vld [vmem:[#allocation7 + $0x8] sm:$0xff]
    %v312 = vld [vmem:[#allocation7 + $0x10] sm:$0xff]
    %v313 = vld [vmem:[#allocation7 + $0x18] sm:$0xff]
    %v314 = vld [vmem:[#allocation7 + $0x20] sm:$0xff]
    %v315 = vld [vmem:[#allocation7 + $0x28] sm:$0xff]
    %v316 = vld [vmem:[#allocation7 + $0x30] sm:$0xff]
    %v317 = vld [vmem:[#allocation7 + $0x38] sm:$0xff]
    %v318 = vld [vmem:[#allocation7 + $0x40] sm:$0xff]
    %v319 = vld [vmem:[#allocation7 + $0x48] sm:$0xff]
    %v320 = vld [vmem:[#allocation7 + $0x50] sm:$0xff]
    %v321 = vld [vmem:[#allocation7 + $0x58] sm:$0xff]
    %v322 = vld [vmem:[#allocation7 + $0x60] sm:$0xff]
    %v323 = vld [vmem:[#allocation7 + $0x68] sm:$0xff]
    %v324 = vld [vmem:[#allocation7 + $0x70] sm:$0xff]
    %v325 = vld [vmem:[#allocation7 + $0x78] sm:$0xff]
    %v326 = vld [vmem:[#allocation7 + $0x80] sm:$0xff]
    %v327 = vld [vmem:[#allocation7 + $0x88] sm:$0xff]
    %v328 = vld [vmem:[#allocation7 + $0x90] sm:$0xff]
    %v329 = vld [vmem:[#allocation7 + $0x98] sm:$0xff]
    %v330 = vld [vmem:[#allocation7 + $0xa0] sm:$0xff]
    %v331 = vld [vmem:[#allocation7 + $0xa8] sm:$0xff]
    %v332 = vld [vmem:[#allocation7 + $0xb0] sm:$0xff]
    %v333 = vld [vmem:[#allocation7 + $0xb8] sm:$0xff]
    %v334 = vld [vmem:[#allocation7 + $0xc0] sm:$0xff]
    %v335 = vld [vmem:[#allocation7 + $0xc8] sm:$0xff]
    %v336 = vld [vmem:[#allocation7 + $0xd0] sm:$0xff]
    %v337 = vld [vmem:[#allocation7 + $0xd8] sm:$0xff]
    %v338 = vld [vmem:[#allocation7 + $0xe0] sm:$0xff]
    %v339 = vld [vmem:[#allocation7 + $0xe8] sm:$0xff]
    %v340 = vld [vmem:[#allocation7 + $0xf0] sm:$0xff]
    %v341 = vld [vmem:[#allocation7 + $0xf8] sm:$0xff]
    %342 = vmatprep.subr.mxu0 %v341
    %343 = vmatpush1.msra.mxu0 %v340
    %344 = vmatprep.subr.mxu0 %v339
    %345 = vmatpush1.msra.mxu0 %v338
    %346 = vmatprep.subr.mxu0 %v337
    %347 = vmatpush1.msra.mxu0 %v336
    %348 = vmatprep.subr.mxu0 %v335
    %349 = vmatpush1.msra.mxu0 %v334
    %350 = vmatprep.subr.mxu0 %v333
    %351 = vmatpush1.msra.mxu0 %v332
    %352 = vmatprep.subr.mxu0 %v331
    %353 = vmatpush1.msra.mxu0 %v330
    %354 = vmatprep.subr.mxu0 %v329
    %355 = vmatpush1.msra.mxu0 %v328
    %356 = vmatprep.subr.mxu0 %v327
    %357 = vmatpush1.msra.mxu0 %v326
    %358 = vmatprep.subr.mxu0 %v325
    %359 = vmatpush1.msra.mxu0 %v324
    %360 = vmatprep.subr.mxu0 %v323
    %361 = vmatpush1.msra.mxu0 %v322
    %362 = vmatprep.subr.mxu0 %v321
    %363 = vmatpush1.msra.mxu0 %v320
    %364 = vmatprep.subr.mxu0 %v319
    %365 = vmatpush1.msra.mxu0 %v318
    %366 = vmatprep.subr.mxu0 %v317
    %367 = vmatpush1.msra.mxu0 %v316
    %368 = vmatprep.subr.mxu0 %v315
    %369 = vmatpush1.msra.mxu0 %v314
    %370 = vmatprep.subr.mxu0 %v313
    %371 = vmatpush1.msra.mxu0 %v312
    %372 = vmatprep.subr.mxu0 %v311
    %373 = vmatpush1.msra.mxu0 %v310
    %374 = vmatprep.subr.mxu0 0.0
    %375 = vmatpush2.msra.mxu0 0.0
    %376 = vmatprep.subr.mxu0 0.0
    %377 = vmatpush2.msra.mxu0 0.0
    %378 = vmatprep.subr.mxu0 0.0
    %379 = vmatpush2.msra.mxu0 0.0
    %380 = vmatprep.subr.mxu0 0.0
    %381 = vmatpush2.msra.mxu0 0.0
    %382 = vmatprep.subr.mxu0 0.0
    %383 = vmatpush2.msra.mxu0 0.0
    %384 = vmatprep.subr.mxu0 0.0
    %385 = vmatpush2.msra.mxu0 0.0
    %386 = vmatprep.subr.mxu0 0.0
    %387 = vmatpush2.msra.mxu0 0.0
    %388 = vmatprep.subr.mxu0 0.0
    %389 = vmatpush2.msra.mxu0 0.0
    %390 = vmatprep.subr.mxu0 0.0
    %391 = vmatpush2.msra.mxu0 0.0
    %392 = vmatprep.subr.mxu0 0.0
    %393 = vmatpush2.msra.mxu0 0.0
    %394 = vmatprep.subr.mxu0 0.0
    %395 = vmatpush2.msra.mxu0 0.0
    %396 = vmatprep.subr.mxu0 0.0
    %397 = vmatpush2.msra.mxu0 0.0
    %398 = vmatprep.subr.mxu0 0.0
    %399 = vmatpush2.msra.mxu0 0.0
    %400 = vmatprep.subr.mxu0 0.0
    %401 = vmatpush2.msra.mxu0 0.0
    %402 = vmatprep.subr.mxu0 0.0
    %403 = vmatpush2.msra.mxu0 0.0
    %404 = vmatprep.subr.mxu0 0.0
    %405 = vmatpush2.msra.mxu0 0.0
    %406 = vmatprep.mubr.f32.mxu0 0.0
    %407 = vmatmul.mubr.f32.gmra.mxu0 %v190
    %v408 = vpop.f32.mrf.mxu0
    %v409 = vadd.f32 0.0, %v408
    %v410 = vpop.f32.mrf.mxu0
    %v411 = vadd.f32 0.0, %v410
    %412 = vdwg.mxu0
    %v413 = vadd.f32 %v306, %v409
    %v414 = vadd.f32 %v308, %v411
    %s415 = scalar_lea.vmem [#allocation10], 8
    %416 = vst [vmem:[%s415] sm:$0xff] %v413
    %v417 = vmax.f32 %v414, 0.0
    %s418 = scalar_lea.vmem [#allocation2], 16
    %v419 = vld [vmem:[%s418] sm:$0xff]
    %s420 = scalar_lea.vmem [#allocation5], 512
    %v421 = vld [vmem:[%s420] sm:$0xff]
    %v422 = vld [vmem:[%s420 + $0x10] sm:$0xff]
    %v423 = vld [vmem:[%s420 + $0x20] sm:$0xff]
    %v424 = vld [vmem:[%s420 + $0x30] sm:$0xff]
    %v425 = vld [vmem:[%s420 + $0x40] sm:$0xff]
    %v426 = vld [vmem:[%s420 + $0x50] sm:$0xff]
    %v427 = vld [vmem:[%s420 + $0x60] sm:$0xff]
    %v428 = vld [vmem:[%s420 + $0x70] sm:$0xff]
    %v429 = vld [vmem:[%s420 + $0x80] sm:$0xff]
    %v430 = vld [vmem:[%s420 + $0x90] sm:$0xff]
    %v431 = vld [vmem:[%s420 + $0xa0] sm:$0xff]
    %v432 = vld [vmem:[%s420 + $0xb0] sm:$0xff]
    %v433 = vld [vmem:[%s420 + $0xc0] sm:$0xff]
    %v434 = vld [vmem:[%s420 + $0xd0] sm:$0xff]
    %v435 = vld [vmem:[%s420 + $0xe0] sm:$0xff]
    %v436 = vld [vmem:[%s420 + $0xf0] sm:$0xff]
    %s437 = scalar_lea.vmem [#allocation8], 4
    %v438 = vld [vmem:[%s437] sm:$0x1]
    %v440 = vlaneseq
    %v441 = vshrl.u32 %v440, 7
    %v442 = vsub.s32 0, %v441
    %v443 = vrot.slane %v438, %v442
    %445 = vmatprep.subr.mxu0 0.0
    %446 = vmatpush1.msra.mxu0 %v436
    %447 = vmatprep.subr.mxu0 0.0
    %448 = vmatpush1.msra.mxu0 %v435
    %449 = vmatprep.subr.mxu0 0.0
    %450 = vmatpush1.msra.mxu0 %v434
    %451 = vmatprep.subr.mxu0 0.0
    %452 = vmatpush1.msra.mxu0 %v433
    %453 = vmatprep.subr.mxu0 0.0
    %454 = vmatpush1.msra.mxu0 %v432
    %455 = vmatprep.subr.mxu0 0.0
    %456 = vmatpush1.msra.mxu0 %v431
    %457 = vmatprep.subr.mxu0 0.0
    %458 = vmatpush1.msra.mxu0 %v430
    %459 = vmatprep.subr.mxu0 0.0
    %460 = vmatpush1.msra.mxu0 %v429
    %461 = vmatprep.subr.mxu0 0.0
    %462 = vmatpush1.msra.mxu0 %v428
    %463 = vmatprep.subr.mxu0 0.0
    %464 = vmatpush1.msra.mxu0 %v427
    %465 = vmatprep.subr.mxu0 0.0
    %466 = vmatpush1.msra.mxu0 %v426
    %467 = vmatprep.subr.mxu0 0.0
    %468 = vmatpush1.msra.mxu0 %v425
    %469 = vmatprep.subr.mxu0 0.0
    %470 = vmatpush1.msra.mxu0 %v424
    %471 = vmatprep.subr.mxu0 0.0
    %472 = vmatpush1.msra.mxu0 %v423
    %473 = vmatprep.subr.mxu0 0.0
    %474 = vmatpush1.msra.mxu0 %v422
    %475 = vmatprep.subr.mxu0 0.0
    %476 = vmatpush1.msra.mxu0 %v421
    %477 = vmatprep.subr.mxu0 0.0
    %478 = vmatpush2.msra.mxu0 0.0
    %479 = vmatprep.subr.mxu0 0.0
    %480 = vmatpush2.msra.mxu0 0.0
    %481 = vmatprep.subr.mxu0 0.0
    %482 = vmatpush2.msra.mxu0 0.0
    %483 = vmatprep.subr.mxu0 0.0
    %484 = vmatpush2.msra.mxu0 0.0
    %485 = vmatprep.subr.mxu0 0.0
    %486 = vmatpush2.msra.mxu0 0.0
    %487 = vmatprep.subr.mxu0 0.0
    %488 = vmatpush2.msra.mxu0 0.0
    %489 = vmatprep.subr.mxu0 0.0
    %490 = vmatpush2.msra.mxu0 0.0
    %491 = vmatprep.subr.mxu0 0.0
    %492 = vmatpush2.msra.mxu0 0.0
    %493 = vmatprep.subr.mxu0 0.0
    %494 = vmatpush2.msra.mxu0 0.0
    %495 = vmatprep.subr.mxu0 0.0
    %496 = vmatpush2.msra.mxu0 0.0
    %497 = vmatprep.subr.mxu0 0.0
    %498 = vmatpush2.msra.mxu0 0.0
    %499 = vmatprep.subr.mxu0 0.0
    %500 = vmatpush2.msra.mxu0 0.0
    %501 = vmatprep.subr.mxu0 0.0
    %502 = vmatpush2.msra.mxu0 0.0
    %503 = vmatprep.subr.mxu0 0.0
    %504 = vmatpush2.msra.mxu0 0.0
    %505 = vmatprep.subr.mxu0 0.0
    %506 = vmatpush2.msra.mxu0 0.0
    %507 = vmatprep.subr.mxu0 0.0
    %508 = vmatpush2.msra.mxu0 0.0
    %509 = vmatprep.mubr.f32.mxu0 0.0
    %510 = vmatmul.mubr.f32.gmra.mxu0 %v419
    %v511 = vpop.f32.mrf.mxu0
    %v512 = vadd.f32 %v443, %v511
    %v513 = vpop.f32.mrf.mxu0
    %514 = vdwg.mxu0
    %s515 = scalar_lea.vmem [#allocation7], 256
    %v516 = vld [vmem:[%s515] sm:$0xff]
    %v517 = vld [vmem:[%s515 + $0x10] sm:$0xff]
    %v518 = vld [vmem:[%s515 + $0x20] sm:$0xff]
    %v519 = vld [vmem:[%s515 + $0x30] sm:$0xff]
    %v520 = vld [vmem:[%s515 + $0x40] sm:$0xff]
    %v521 = vld [vmem:[%s515 + $0x50] sm:$0xff]
    %v522 = vld [vmem:[%s515 + $0x60] sm:$0xff]
    %v523 = vld [vmem:[%s515 + $0x70] sm:$0xff]
    %v524 = vld [vmem:[%s515 + $0x80] sm:$0xff]
    %v525 = vld [vmem:[%s515 + $0x90] sm:$0xff]
    %v526 = vld [vmem:[%s515 + $0xa0] sm:$0xff]
    %v527 = vld [vmem:[%s515 + $0xb0] sm:$0xff]
    %v528 = vld [vmem:[%s515 + $0xc0] sm:$0xff]
    %v529 = vld [vmem:[%s515 + $0xd0] sm:$0xff]
    %v530 = vld [vmem:[%s515 + $0xe0] sm:$0xff]
    %v531 = vld [vmem:[%s515 + $0xf0] sm:$0xff]
    %532 = vmatprep.subr.mxu0 0.0
    %533 = vmatpush1.msra.mxu0 %v531
    %534 = vmatprep.subr.mxu0 0.0
    %535 = vmatpush1.msra.mxu0 %v530
    %536 = vmatprep.subr.mxu0 0.0
    %537 = vmatpush1.msra.mxu0 %v529
    %538 = vmatprep.subr.mxu0 0.0
    %539 = vmatpush1.msra.mxu0 %v528
    %540 = vmatprep.subr.mxu0 0.0
    %541 = vmatpush1.msra.mxu0 %v527
    %542 = vmatprep.subr.mxu0 0.0
    %543 = vmatpush1.msra.mxu0 %v526
    %544 = vmatprep.subr.mxu0 0.0
    %545 = vmatpush1.msra.mxu0 %v525
    %546 = vmatprep.subr.mxu0 0.0
    %547 = vmatpush1.msra.mxu0 %v524
    %548 = vmatprep.subr.mxu0 0.0
    %549 = vmatpush1.msra.mxu0 %v523
    %550 = vmatprep.subr.mxu0 0.0
    %551 = vmatpush1.msra.mxu0 %v522
    %552 = vmatprep.subr.mxu0 0.0
    %553 = vmatpush1.msra.mxu0 %v521
    %554 = vmatprep.subr.mxu0 0.0
    %555 = vmatpush1.msra.mxu0 %v520
    %556 = vmatprep.subr.mxu0 0.0
    %557 = vmatpush1.msra.mxu0 %v519
    %558 = vmatprep.subr.mxu0 0.0
    %559 = vmatpush1.msra.mxu0 %v518
    %560 = vmatprep.subr.mxu0 0.0
    %561 = vmatpush1.msra.mxu0 %v517
    %562 = vmatprep.subr.mxu0 0.0
    %563 = vmatpush1.msra.mxu0 %v516
    %564 = vmatprep.subr.mxu0 0.0
    %565 = vmatpush2.msra.mxu0 0.0
    %566 = vmatprep.subr.mxu0 0.0
    %567 = vmatpush2.msra.mxu0 0.0
    %568 = vmatprep.subr.mxu0 0.0
    %569 = vmatpush2.msra.mxu0 0.0
    %570 = vmatprep.subr.mxu0 0.0
    %571 = vmatpush2.msra.mxu0 0.0
    %572 = vmatprep.subr.mxu0 0.0
    %573 = vmatpush2.msra.mxu0 0.0
    %574 = vmatprep.subr.mxu0 0.0
    %575 = vmatpush2.msra.mxu0 0.0
    %576 = vmatprep.subr.mxu0 0.0
    %577 = vmatpush2.msra.mxu0 0.0
    %578 = vmatprep.subr.mxu0 0.0
    %579 = vmatpush2.msra.mxu0 0.0
    %580 = vmatprep.subr.mxu0 0.0
    %581 = vmatpush2.msra.mxu0 0.0
    %582 = vmatprep.subr.mxu0 0.0
    %583 = vmatpush2.msra.mxu0 0.0
    %584 = vmatprep.subr.mxu0 0.0
    %585 = vmatpush2.msra.mxu0 0.0
    %586 = vmatprep.subr.mxu0 0.0
    %587 = vmatpush2.msra.mxu0 0.0
    %588 = vmatprep.subr.mxu0 0.0
    %589 = vmatpush2.msra.mxu0 0.0
    %590 = vmatprep.subr.mxu0 0.0
    %591 = vmatpush2.msra.mxu0 0.0
    %592 = vmatprep.subr.mxu0 0.0
    %593 = vmatpush2.msra.mxu0 0.0
    %594 = vmatprep.subr.mxu0 0.0
    %595 = vmatpush2.msra.mxu0 0.0
    %596 = vmatprep.mubr.f32.mxu0 0.0
    %597 = vmatmul.mubr.f32.gmra.mxu0 %v417
    %v598 = vpop.f32.mrf.mxu0
    %v599 = vadd.f32 0.0, %v598
    %v600 = vpop.f32.mrf.mxu0
    %601 = vdwg.mxu0
    %v602 = vadd.f32 %v512, %v599
    %s603 = scalar_lea.vmem [#allocation10], 16
    %604 = vst [vmem:[%s603] sm:$0xff] %v602
    // Predicated region
    $region34: #{tpu_custom_call.1} parent=1 // pred_check
      _
    $region35: #{tpu_custom_call.1} parent=1 // pred_check_branch
      %606 = sbr.rel (0) target = $region37
    $region36: #{tpu_custom_call.1} parent=1 // pred_region
      %s608 = ssub.s32 384, 384
      %609 = vsyncadd [#allocation4], %s608
      %s610 = sshll.u32 [#allocation10], 4
      %s611 = int_to_ptr.vmem [resolvable:$true] %s610
      %616 = dma.vmem_to_hbm [thread:$0]  %s611, 384, %s4, [#allocation4], 128, 128, 8
    $region37: #{tpu_custom_call.1} parent=1 // pred_fallthru
      _
    // Predicated region
    $region38: #{tpu_custom_call.1} parent=1 // pred_check
      _
    $region39: #{tpu_custom_call.1} parent=1 // pred_check_branch
      %618 = sbr.rel (0) target = $region41
    $region40: #{tpu_custom_call.1} parent=1 // pred_region
      %619 = dma.done [#allocation4], 384
    $region41: #{tpu_custom_call.1} parent=1 // pred_fallthru
      _
    %620 = vsyncpa [#allocation3], 1
    %621 = vsyncpa [#allocation6], 1
    %622 = vsyncpa [#allocation9], 1
    %623 = vsyncpa [#allocation4], 1

</llo_original>
